<compile_context>
chip_gen: v6e
topology: v6e:2x2x1
jax: 0.10.0
libtpu: 0.0.40
codegen_flags: <defaults>
</compile_context>

<pallas_src>
import functools

import jax
import jax.numpy as jnp
from jax import lax
from jax.experimental import pallas as pl
from jax.experimental.pallas import tpu as pltpu


def _round_up(x, m):
    return (x + m - 1) // m * m


def channel_attention_kernel(x_ref, w1t_ref, w2t_ref, o_ref,
                             sum_acc, max_acc, *, hw_total):
    # x_ref:   (tb, C, thw)  input tile (tb batch rows, thw spatial chunk)
    # w1t_ref: (C, C_red)    fc1 weight, pre-transposed (resident block)
    # w2t_ref: (C_red, C)    fc2 weight, pre-transposed (resident block)
    # o_ref:   (tb, C)       output tile
    # sum_acc: (tb, C) f32   running spatial sum
    # max_acc: (tb, C) f32   running spatial max
    h = pl.program_id(1)
    n_hw = pl.num_programs(1)
    tb = o_ref.shape[0]
    thw = x_ref.shape[-1]

    x = x_ref[...]                                   # native dtype, no upcast

    if hw_total % thw != 0:
        # Ragged final spatial chunk: lanes past hw_total hold undefined data
        # (Pallas out-of-bounds reads) -> exclude them from the reductions.
        col = h * thw + lax.broadcasted_iota(jnp.int32, x.shape, 2)
        valid = col < hw_total
        x_sum = jnp.where(valid, x, jnp.zeros((), dtype=x.dtype))
        x_max = jnp.where(valid, x, jnp.asarray(-jnp.inf, dtype=x.dtype))
    else:
        x_sum = x
        x_max = x

    part_sum = jnp.sum(x_sum, axis=-1, dtype=jnp.float32)     # (tb, C)
    part_max = jnp.max(x_max, axis=-1).astype(jnp.float32)    # (tb, C)

    @pl.when(h == 0)
    def _():
        sum_acc[...] = jnp.zeros_like(sum_acc)
        max_acc[...] = jnp.full_like(max_acc, -jnp.inf)

    sum_acc[...] = sum_acc[...] + part_sum
    max_acc[...] = jnp.maximum(max_acc[...], part_max)

    @pl.when(h == n_hw - 1)
    def _():
        avg = sum_acc[...] * jnp.float32(1.0 / hw_total)
        # Stack avg / max branches -> one fc1 + ReLU + fc2 matmul pair.
        pooled = jnp.concatenate([avg, max_acc[...]], axis=0)   # (2*tb, C)
        hidden = jnp.maximum(
            jnp.dot(pooled, w1t_ref[...],
                    preferred_element_type=jnp.float32), 0.0)   # (2*tb, C_red)
        out = jnp.dot(hidden, w2t_ref[...],
                      preferred_element_type=jnp.float32)       # (2*tb, C)
        o_ref[...] = (out[:tb] + out[tb:]).astype(o_ref.dtype)


def _vmem_capacity_bytes():
    try:
        cap = int(pltpu.get_tpu_info().vmem_capacity_bytes)
        if cap > 0:
            return cap
    except Exception:
        pass
    return 64 * 1024 * 1024           # conservative default (v7x per-core VMEM)


def _choose_tiles(B, C, HW, itemsize, vmem_bytes):
    """Pick (tb, thw): per-step x-tile DMA targets ~12-16 MiB (generation-aware
    via VMEM capacity) while double-buffered tiles stay well inside physical
    VMEM, and block dims satisfy the (8, 128) BlockSpec rules."""
    target = min(16 * 1024 * 1024, (3 * vmem_bytes) // 16)
    sub = max(8, 32 // itemsize)                 # sublane pack for this dtype
    lane_hw = _round_up(HW, 128)
    per_sample = _round_up(C, sub) * lane_hw * itemsize
    tb_fit = target // per_sample

    if tb_fit >= B:
        # Whole batch fits in one tile; still split into two aligned steps when
        # alignment allows it so both v7x TensorCores get work.
        tb = _round_up(pl.cdiv(B, 2), 8) if B >= 16 else B
        thw = HW
    elif tb_fit >= 8:
        tb = (tb_fit // 8) * 8                   # sublane-aligned output blocks
        thw = HW
        n_b = pl.cdiv(B, tb)
        if n_b > 1 and n_b % 2 == 1:             # prefer even step count (v7x)
            cand = _round_up(pl.cdiv(B, n_b + 1), 8)
            if cand >= 8 and pl.cdiv(B, cand) % 2 == 0:
                tb = cand
    else:
        # Even a handful of samples at full HW blows the budget: chunk the
        # spatial axis and keep running accumulators in VMEM scratch.
        tb = B if B < 8 else 8
        row_bytes = tb * _round_up(C, sub) * itemsize
        thw = max(128, (target // row_bytes) // 128 * 128)
        thw = min(thw, lane_hw)
    return int(tb), int(thw)


def _vmem_limit_bytes(tb, thw, C, C_red, x_dtype, w_dtype, out_dtype):
    """Scoped-VMEM limit derived from the actual block sizes (+ margin)."""
    def tile_bytes(rows, cols, dtype):
        it = jnp.dtype(dtype).itemsize
        sub = max(8, 32 // it)
        return _round_up(rows, sub) * _round_up(cols, 128) * it

    x_blk = tb * tile_bytes(C, thw, x_dtype)
    w_blk = tile_bytes(C, C_red, w_dtype) + tile_bytes(C_red, C, w_dtype)
    o_blk = tile_bytes(tb, C, out_dtype)
    scratch = 2 * tile_bytes(tb, C, jnp.float32)
    total = 2 * (x_blk + w_blk + o_blk) + scratch + (8 << 20)
    return int(max(total, 32 << 20))


def channel_attention(x, w1, w2, *, tb=None, thw=None):
    """x: (B, C, H, W); w1: (C_red, C); w2: (C, C_red) -> (B, C, 1, 1).

    Computes fc2(relu(fc1(avg_pool(x)))) + fc2(relu(fc1(max_pool(x)))) with
    bias-free 1x1 convs (no sigmoid), matching the PyTorch module."""
    B, C, H, W = x.shape
    HW = H * W
    C_red = w1.shape[0]

    # Lane-dense layout: spatial axis last; pre-transpose weights once on host.
    x2 = x.reshape(B, C, HW)
    w1t = jnp.transpose(w1)                      # (C, C_red)
    w2t = jnp.transpose(w2)                      # (C_red, C)

    itemsize = jnp.dtype(x.dtype).itemsize
    tb_auto, thw_auto = _choose_tiles(B, C, HW, itemsize, _vmem_capacity_bytes())
    tb = tb_auto if tb is None else int(tb)
    thw = thw_auto if thw is None else int(thw)
    n_b = pl.cdiv(B, tb)
    n_hw = pl.cdiv(HW, thw)

    kernel = functools.partial(channel_attention_kernel, hw_total=HW)

    out = pl.pallas_call(
        kernel,
        out_shape=jax.ShapeDtypeStruct((B, C), x.dtype),
        grid_spec=pltpu.PrefetchScalarGridSpec(
            num_scalar_prefetch=0,
            grid=(n_b, n_hw),
            in_specs=[
                pl.BlockSpec((tb, C, thw), lambda b, h: (b, 0, h)),
                pl.BlockSpec((C, C_red), lambda b, h: (0, 0)),
                pl.BlockSpec((C_red, C), lambda b, h: (0, 0)),
            ],
            out_specs=pl.BlockSpec((tb, C), lambda b, h: (b, 0)),
            scratch_shapes=[
                pltpu.VMEM((tb, C), jnp.float32),    # running spatial sum
                pltpu.VMEM((tb, C), jnp.float32),    # running spatial max
            ],
        ),
        compiler_params=pltpu.CompilerParams(
            dimension_semantics=("parallel", "arbitrary"),
            vmem_limit_bytes=_vmem_limit_bytes(
                tb, thw, C, C_red, x.dtype, w1.dtype, x.dtype)),
    )(x2, w1t, w2t)

    return out.reshape(B, C, 1, 1)


def channel_attention_ref(x, w1, w2):
    """Pure-JAX reference mirroring the PyTorch module."""
    xf = x.astype(jnp.float32)
    avg = jnp.mean(xf, axis=(2, 3))   # (B, C)
    mx = jnp.max(xf, axis=(2, 3))     # (B, C)

    def mlp(v):
        h = jnp.maximum(v @ w1.astype(jnp.float32).T, 0.0)
        return h @ w2.astype(jnp.float32).T

    out = mlp(avg) + mlp(mx)
    return out.astype(x.dtype).reshape(x.shape[0], x.shape[1], 1, 1)


if __name__ == "__main__":
    keys = jax.random.split(jax.random.PRNGKey(0), 9)

    # --- Test 1: the module's nominal small config (reduction=2) -----------
    B, C, H, W = 2, 4, 16, 16
    C_red = C // 2
    x = jax.random.normal(keys[0], (B, C, H, W), dtype=jnp.float32)
    w1 = jax.random.normal(keys[1], (C_red, C), dtype=jnp.float32) * 0.1
    w2 = jax.random.normal(keys[2], (C, C_red), dtype=jnp.float32) * 0.1
    out = jax.block_until_ready(channel_attention(x, w1, w2))
    ref = channel_attention_ref(x, w1, w2)
    assert out.shape == (B, C, 1, 1)
    assert jnp.allclose(out, ref, atol=1e-5, rtol=1e-5), "test1 mismatch"

    # --- Test 2: forced batch tiling + spatial chunking (ragged tails) -----
    B, C, H, W = 10, 12, 20, 20      # HW=400 -> 4 chunks of 128, last ragged
    C_red = C // 2
    x = jax.random.normal(keys[3], (B, C, H, W), dtype=jnp.float32)
    w1 = jax.random.normal(keys[4], (C_red, C), dtype=jnp.float32) * 0.1
    w2 = jax.random.normal(keys[5], (C, C_red), dtype=jnp.float32) * 0.1
    out = jax.block_until_ready(channel_attention(x, w1, w2, tb=8, thw=128))
    ref = channel_attention_ref(x, w1, w2)
    assert out.shape == (B, C, 1, 1)
    assert jnp.allclose(out, ref, atol=1e-4, rtol=1e-4), "test2 mismatch"

    # --- Test 3: bf16 inputs/weights, default tile selection ---------------
    B, C, H, W = 4, 16, 16, 16
    C_red = C // 2
    x = jax.random.normal(keys[6], (B, C, H, W), dtype=jnp.bfloat16)
    w1 = (jax.random.normal(keys[7], (C_red, C), dtype=jnp.float32)
          * 0.1).astype(jnp.bfloat16)
    w2 = (jax.random.normal(keys[8], (C, C_red), dtype=jnp.float32)
          * 0.1).astype(jnp.bfloat16)
    out = jax.block_until_ready(channel_attention(x, w1, w2))
    ref = channel_attention_ref(x, w1, w2)
    assert out.shape == (B, C, 1, 1)
    assert jnp.allclose(out.astype(jnp.float32), ref.astype(jnp.float32),
                        atol=2e-2, rtol=2e-2), "test3 mismatch"

    print("KERNEL_OK")
</pallas_src>

<mosaic_0001>
module attributes {stable_mosaic.version = 11 : i64} {
  func.func @channel_attention_kernel(%arg0: i32, %arg1: i32, %arg2: memref<2x4x256xf32, #tpu.memory_space<vmem>>, %arg3: memref<4x2xf32, #tpu.memory_space<vmem>>, %arg4: memref<2x4xf32, #tpu.memory_space<vmem>>, %arg5: memref<2x4xf32, #tpu.memory_space<vmem>>, %arg6: memref<2x4xf32, #tpu.memory_space<vmem>>, %arg7: memref<2x4xf32, #tpu.memory_space<vmem>>) attributes {dimension_semantics = [#tpu.dimension_semantics<parallel>, #tpu.dimension_semantics<arbitrary>], iteration_bounds = array<i64: 1, 1>, scalar_prefetch = 0 : i64, scratch_operands = 2 : i64, tpu.core_type = #tpu.core_type<tc>, window_params = [{transform_indices = @transform_0, window_bounds = array<i64: 2, 4, 256>}, {pipeline_mode = #tpu.pipeline_mode<synchronous>, transform_indices = @transform_1, window_bounds = array<i64: 4, 2>}, {pipeline_mode = #tpu.pipeline_mode<synchronous>, transform_indices = @transform_2, window_bounds = array<i64: 2, 4>}, {transform_indices = @transform_3, window_bounds = array<i64: 2, 4>}]} {
    %c0 = arith.constant 0 : index
    %c0_0 = arith.constant 0 : index
    %c0_1 = arith.constant 0 : index
    %0 = vector.load %arg2[%c0, %c0_0, %c0_1] : memref<2x4x256xf32, #tpu.memory_space<vmem>>, vector<2x4x256xf32>
    %cst = arith.constant dense<0.000000e+00> : vector<2x4xf32>
    %1 = vector.multi_reduction <add>, %0, %cst [2] : vector<2x4x256xf32> to vector<2x4xf32>
    %cst_2 = arith.constant dense<0xFF800000> : vector<2x4xf32>
    %2 = vector.multi_reduction <maximumf>, %0, %cst_2 [2] : vector<2x4x256xf32> to vector<2x4xf32>
    %c0_i32 = arith.constant 0 : i32
    %3 = arith.cmpi eq, %arg1, %c0_i32 : i32
    %4 = arith.extui %3 : i1 to i32
    %c0_i32_3 = arith.constant 0 : i32
    %5 = arith.cmpi ne, %4, %c0_i32_3 : i32
    scf.if %5 {
      %cst_14 = arith.constant 0.000000e+00 : f32
      %15 = vector.broadcast %cst_14 : f32 to vector<2x4xf32>
      %c0_15 = arith.constant 0 : index
      %c0_16 = arith.constant 0 : index
      %16 = vector.load %arg6[%c0_15, %c0_16] : memref<2x4xf32, #tpu.memory_space<vmem>>, vector<2x4xf32>
      tpu.vector_store %arg6[%c0_15, %c0_16], %15 {strides = array<i32>} : memref<2x4xf32, #tpu.memory_space<vmem>>, vector<2x4xf32>,
      %cst_17 = arith.constant 0xFF800000 : f32
      %17 = vector.broadcast %cst_17 : f32 to vector<2x4xf32>
      %c0_18 = arith.constant 0 : index
      %c0_19 = arith.constant 0 : index
      %18 = vector.load %arg7[%c0_18, %c0_19] : memref<2x4xf32, #tpu.memory_space<vmem>>, vector<2x4xf32>
      tpu.vector_store %arg7[%c0_18, %c0_19], %17 {strides = array<i32>} : memref<2x4xf32, #tpu.memory_space<vmem>>, vector<2x4xf32>,
    } else {
    }
    %c0_4 = arith.constant 0 : index
    %c0_5 = arith.constant 0 : index
    %6 = vector.load %arg6[%c0_4, %c0_5] : memref<2x4xf32, #tpu.memory_space<vmem>>, vector<2x4xf32>
    %7 = arith.addf %6, %1 : vector<2x4xf32>
    %c0_6 = arith.constant 0 : index
    %c0_7 = arith.constant 0 : index
    %8 = vector.load %arg6[%c0_6, %c0_7] : memref<2x4xf32, #tpu.memory_space<vmem>>, vector<2x4xf32>
    tpu.vector_store %arg6[%c0_6, %c0_7], %7 {strides = array<i32>} : memref<2x4xf32, #tpu.memory_space<vmem>>, vector<2x4xf32>,
    %c0_8 = arith.constant 0 : index
    %c0_9 = arith.constant 0 : index
    %9 = vector.load %arg7[%c0_8, %c0_9] : memref<2x4xf32, #tpu.memory_space<vmem>>, vector<2x4xf32>
    %10 = arith.maximumf %9, %2 : vector<2x4xf32>
    %c0_10 = arith.constant 0 : index
    %c0_11 = arith.constant 0 : index
    %11 = vector.load %arg7[%c0_10, %c0_11] : memref<2x4xf32, #tpu.memory_space<vmem>>, vector<2x4xf32>
    tpu.vector_store %arg7[%c0_10, %c0_11], %10 {strides = array<i32>} : memref<2x4xf32, #tpu.memory_space<vmem>>, vector<2x4xf32>,
    %c0_i32_12 = arith.constant 0 : i32
    %12 = arith.cmpi eq, %arg1, %c0_i32_12 : i32
    %13 = arith.extui %12 : i1 to i32
    %c0_i32_13 = arith.constant 0 : i32
    %14 = arith.cmpi ne, %13, %c0_i32_13 : i32
    scf.if %14 {
      %c0_14 = arith.constant 0 : index
      %c0_15 = arith.constant 0 : index
      %15 = vector.load %arg6[%c0_14, %c0_15] : memref<2x4xf32, #tpu.memory_space<vmem>>, vector<2x4xf32>
      %cst_16 = arith.constant 3.906250e-03 : f32
      %16 = vector.broadcast %cst_16 : f32 to vector<2x4xf32>
      %17 = arith.mulf %15, %16 : vector<2x4xf32>
      %c0_17 = arith.constant 0 : index
      %c0_18 = arith.constant 0 : index
      %18 = vector.load %arg7[%c0_17, %c0_18] : memref<2x4xf32, #tpu.memory_space<vmem>>, vector<2x4xf32>
      %19 = tpu.concatenate %17, %18 in 0 : vector<2x4xf32>, vector<2x4xf32> -> vector<4x4xf32>
      %c0_19 = arith.constant 0 : index
      %c0_20 = arith.constant 0 : index
      %20 = vector.load %arg3[%c0_19, %c0_20] : memref<4x2xf32, #tpu.memory_space<vmem>>, vector<4x2xf32>
      %cst_21 = arith.constant dense<0.000000e+00> : vector<4x2xf32>
      %21 = tpu.matmul %19, %20, %cst_21 {dimension_numbers = #tpu.dot_dimension_numbers<[1], [0], [0], [1], [0, 0, 1, 1], [], []>} : vector<4x4xf32>, vector<4x2xf32>, vector<4x2xf32> -> vector<4x2xf32>
      %cst_22 = arith.constant 0.000000e+00 : f32
      %22 = vector.broadcast %cst_22 : f32 to vector<4x2xf32>
      %23 = arith.maximumf %21, %22 : vector<4x2xf32>
      %c0_23 = arith.constant 0 : index
      %c0_24 = arith.constant 0 : index
      %24 = vector.load %arg4[%c0_23, %c0_24] : memref<2x4xf32, #tpu.memory_space<vmem>>, vector<2x4xf32>
      %cst_25 = arith.constant dense<0.000000e+00> : vector<4x4xf32>
      %25 = tpu.matmul %23, %24, %cst_25 {dimension_numbers = #tpu.dot_dimension_numbers<[1], [0], [0], [1], [0, 0, 1, 1], [], []>} : vector<4x2xf32>, vector<2x4xf32>, vector<4x4xf32> -> vector<4x4xf32>
      %26 = vector.extract_strided_slice %25 {offsets = [0, 0], sizes = [2, 4], strides = [1, 1]} : vector<4x4xf32> to vector<2x4xf32>
      %27 = vector.extract_strided_slice %25 {offsets = [2, 0], sizes = [2, 4], strides = [1, 1]} : vector<4x4xf32> to vector<2x4xf32>
      %28 = arith.addf %26, %27 : vector<2x4xf32>
      %c0_26 = arith.constant 0 : index
      %c0_27 = arith.constant 0 : index
      %29 = vector.load %arg5[%c0_26, %c0_27] : memref<2x4xf32, #tpu.memory_space<vmem>>, vector<2x4xf32>
      tpu.vector_store %arg5[%c0_26, %c0_27], %28 {strides = array<i32>} : memref<2x4xf32, #tpu.memory_space<vmem>>, vector<2x4xf32>,
    } else {
    }
    return
  }
  func.func @transform_0(%arg0: i32, %arg1: i32) -> (i32, i32, i32) {
    %c0_i32 = arith.constant 0 : i32
    %c0_i32_0 = arith.constant 0 : i32
    return %arg0, %c0_i32, %arg1 : i32, i32, i32
  }
  func.func @transform_1(%arg0: i32, %arg1: i32) -> (i32, i32) {
    %c0_i32 = arith.constant 0 : i32
    %c0_i32_0 = arith.constant 0 : i32
    %c0_i32_1 = arith.constant 0 : i32
    return %c0_i32, %c0_i32_0 : i32, i32
  }
  func.func @transform_2(%arg0: i32, %arg1: i32) -> (i32, i32) {
    %c0_i32 = arith.constant 0 : i32
    %c0_i32_0 = arith.constant 0 : i32
    %c0_i32_1 = arith.constant 0 : i32
    return %c0_i32, %c0_i32_0 : i32, i32
  }
  func.func @transform_3(%arg0: i32, %arg1: i32) -> (i32, i32) {
    %c0_i32 = arith.constant 0 : i32
    %c0_i32_0 = arith.constant 0 : i32
    return %arg0, %c0_i32 : i32, i32
  }
}

</mosaic_0001>

<llo_original>
// kernel: tpu_custom_call.1
$region0: #{tpu_custom_call.1}
  #allocation0 [shape = 'u32[]', space=smem, size = 0x4, offset = 0x4, fixed_abs, tag = 'smem constant byte address 0x4 - core index']
  #allocation1 [shape = 'u32[144,128]{1,0:T(1,128)}', space=vmem, size = 0x12000, scoped, tag = 'internal scratch']
  #allocation2 [shape = 'f32[2,4]{1,0:T(2,128)}', space=vmem, size = 0x400, scoped, tag = 'scratch operand']
  #allocation3 [shape = 'f32[2,4]{1,0:T(2,128)}', space=vmem, size = 0x400, scoped, tag = 'scratch operand']
  %s0 = inlined_call_operand.hbm [shape: f32[2,4,256], index: 0, kind: input, shape index: {}]
  %s1 = inlined_call_operand.vmem [shape: f32[4,2], index: 1, kind: input, shape index: {}]
  %s2 = inlined_call_operand.vmem [shape: f32[2,4], index: 2, kind: input, shape index: {}]
  %s3 = inlined_call_operand.hbm [shape: f32[2,4], index: 3, kind: output, shape index: {}]
  %s4 = sld [smem:[#allocation0]]
  $region34: #{tpu_custom_call.1} parent=0
    _
  %s6 = ssub.s32 1, %s4
  %s7 = scalar_select 0, %s6, %s4
  $region1: #{tpu_custom_call.1} parent=0
    #allocation4 [shape = 'u8[8192]{0}', space=vmem, size = 0x2000, scoped, tag = 'input window, operand 0, single buffered']
    #allocation5 [shape = 's32[1]{0}', space=sflag, size = 0x4, scoped, tag = 'scoped memory for tpu_custom_call.1']
    #allocation6 [shape = 's32[1]{0}', space=sflag, size = 0x4, scoped, tag = 'scoped memory for tpu_custom_call.1']
    #allocation7 [shape = 'u8[1024]{0}', space=vmem, size = 0x400, scoped, tag = 'output window, operand 0, single buffered']
    %8 = vsyncpa [#allocation5], 0
    %9 = vsyncpa [#allocation6], 0
    // Predicated region
    $region2: #{tpu_custom_call.1} parent=1 // pred_check
      _
    $region3: #{tpu_custom_call.1} parent=1 // pred_check_branch
      %11 = sbr.rel (0) target = $region5
    $region4: #{tpu_custom_call.1} parent=1 // pred_region
      %s13 = ssub.s32 256, 256
      %14 = vsyncadd [#allocation5], %s13
      %s15 = sshll.u32 [#allocation4], 4
      %s16 = int_to_ptr.vmem [resolvable:$true] %s15
      %21 = dma.hbm_to_vmem [thread:$0]  %s0, 256, %s16, [#allocation5], 128, 128, 8
    $region5: #{tpu_custom_call.1} parent=1 // pred_fallthru
      _
    // Predicated region
    $region6: #{tpu_custom_call.1} parent=1 // pred_check
      _
    $region7: #{tpu_custom_call.1} parent=1 // pred_check_branch
      %23 = sbr.rel (0) target = $region9
    $region8: #{tpu_custom_call.1} parent=1 // pred_region
      _
    $region9: #{tpu_custom_call.1} parent=1 // pred_fallthru
      _
    // Predicated region
    $region10: #{tpu_custom_call.1} parent=1 // pred_check
      _
    $region11: #{tpu_custom_call.1} parent=1 // pred_check_branch
      %25 = sbr.rel (0) target = $region13
    $region12: #{tpu_custom_call.1} parent=1 // pred_region
      _
    $region13: #{tpu_custom_call.1} parent=1 // pred_fallthru
      _
    // Predicated region
    $region14: #{tpu_custom_call.1} parent=1 // pred_check
      _
    $region15: #{tpu_custom_call.1} parent=1 // pred_check_branch
      %27 = sbr.rel (0) target = $region17
    $region16: #{tpu_custom_call.1} parent=1 // pred_region
      %28 = dma.done [#allocation5], 256
    $region17: #{tpu_custom_call.1} parent=1 // pred_fallthru
      _
    %v29 = vld [vmem:[#allocation4] sm:$0xff]
    %v30 = vld [vmem:[#allocation4 + $0x8] sm:$0xff]
    %v33 = vcombine.high %v29, %v29
    %v34 = vcombine.high %v30, %v30
    %vm37 = vcmask 1043456
    %v38 = vsel %vm37, %v29, 0.0
    %v39 = vsel %vm37, %v33, 0.0
    %v40 = vadd.f32 %v38, %v39
    %41 = vadd.xlane.f32.xlu0 %v40
    %v42 = vpop.xlane.xlu0 %41
    %v43 = vsel %vm37, %v30, 0.0
    %v44 = vsel %vm37, %v34, 0.0
    %v45 = vadd.f32 %v43, %v44
    %46 = vadd.xlane.f32.xlu0 %v45
    %v47 = vpop.xlane.xlu0 %46
    %v48 = vsel %vm37, %v29, -inf
    %v49 = vsel %vm37, %v33, -inf
    %v50 = vmax.f32 %v48, %v49
    %51 = vmax.xlane.f32.xlu0 %v50
    %v52 = vpop.xlane.xlu0 %51
    %v53 = vsel %vm37, %v30, -inf
    %v54 = vsel %vm37, %v34, -inf
    %v55 = vmax.f32 %v53, %v54
    %56 = vmax.xlane.f32.xlu0 %v55
    %v57 = vpop.xlane.xlu0 %56
    %p58 = scmp.eq.s32.totalorder 0, 0
    // Predicated region
    $region18: #{tpu_custom_call.1} parent=1 // pred_check
      %p59 = pneg %p58
    $region19: #{tpu_custom_call.1} parent=1 // pred_check_branch
      %61 = sbr.rel (%p59) target = $region21
    $region20: #{tpu_custom_call.1} parent=1 // pred_region
      %vm62 = vcmask 25600
      %63 = vst.msk [vmem:[#allocation2] sm:$0x3] %vm62, 0.0
      %64 = vst.msk [vmem:[#allocation3] sm:$0x3] %vm62, -inf
    $region21: #{tpu_custom_call.1} parent=1 // pred_fallthru
      _
    %v65 = vld [vmem:[#allocation2] sm:$0x3]
    %v68 = vlaneseq
    %v69 = vand.u32 %v68, 127
    %v70 = vlaneseq
    %v71 = vshrl.u32 %v70, 7
    %v72 = vsub.s32 %v69, %v71
    %v73 = vrot.slane %v42, %v72
    %v74 = vlaneseq
    %v75 = vshrl.u32 %v74, 7
    %v76 = vsub.s32 %v69, %v75
    %v77 = vrot.slane %v47, %v76
    %vm78 = vcmask 1041409
    %v79 = vsel %vm78, %v77, %v73
    %v81 = vadd.f32 %v65, %v79
    %vm82 = vcmask 25600
    %83 = vst.msk [vmem:[#allocation2] sm:$0x3] %vm82, %v81
    %v84 = vld [vmem:[#allocation3] sm:$0x3]
    %v87 = vlaneseq
    %v88 = vshrl.u32 %v87, 7
    %v89 = vsub.s32 %v69, %v88
    %v90 = vrot.slane %v52, %v89
    %v91 = vlaneseq
    %v92 = vshrl.u32 %v91, 7
    %v93 = vsub.s32 %v69, %v92
    %v94 = vrot.slane %v57, %v93
    %v95 = vsel %vm78, %v94, %v90
    %v97 = vmax.f32 %v84, %v95
    %98 = vst.msk [vmem:[#allocation3] sm:$0x3] %vm82, %v97
    // Predicated region
    $region22: #{tpu_custom_call.1} parent=1 // pred_check
      %p99 = pneg %p58
    $region23: #{tpu_custom_call.1} parent=1 // pred_check_branch
      %101 = sbr.rel (%p99) target = $region25
    $region24: #{tpu_custom_call.1} parent=1 // pred_region
      %v102 = vld [vmem:[#allocation2] sm:$0x3]
      %v103 = vmul.f32 %v102, 0.00390625
      %v104 = vld [vmem:[#allocation3] sm:$0x3]
      %v106 = vrot.slane %v104, 6
      %vm108 = vcmask 1041408
      %v109 = vsel %vm108, %v103, %v106
      %v110 = vld [vmem:[%s1] sm:$0xf]
      %vm111 = vcmask 31744
      %v113 = vsel %vm111, %v109, 0
      %v116 = vsel %vm37, %v110, 0
      %118 = vmatprep.subr.mxu0 0.0
      %119 = vmatpush1.msra.mxu0 0.0
      %120 = vmatprep.subr.mxu0 0.0
      %121 = vmatpush1.msra.mxu0 0.0
      %122 = vmatprep.subr.mxu0 0.0
      %123 = vmatpush1.msra.mxu0 0.0
      %124 = vmatprep.subr.mxu0 0.0
      %125 = vmatpush1.msra.mxu0 0.0
      %126 = vmatprep.subr.mxu0 0.0
      %127 = vmatpush1.msra.mxu0 0.0
      %128 = vmatprep.subr.mxu0 0.0
      %129 = vmatpush1.msra.mxu0 0.0
      %130 = vmatprep.subr.mxu0 0.0
      %131 = vmatpush1.msra.mxu0 0.0
      %132 = vmatprep.subr.mxu0 0.0
      %133 = vmatpush1.msra.mxu0 0.0
      %134 = vmatprep.subr.mxu0 0.0
      %135 = vmatpush1.msra.mxu0 0.0
      %136 = vmatprep.subr.mxu0 0.0
      %137 = vmatpush1.msra.mxu0 0.0
      %138 = vmatprep.subr.mxu0 0.0
      %139 = vmatpush1.msra.mxu0 0.0
      %140 = vmatprep.subr.mxu0 0.0
      %141 = vmatpush1.msra.mxu0 0.0
      %142 = vmatprep.subr.mxu0 0.0
      %143 = vmatpush1.msra.mxu0 0.0
      %144 = vmatprep.subr.mxu0 0.0
      %145 = vmatpush1.msra.mxu0 0.0
      %146 = vmatprep.subr.mxu0 0.0
      %147 = vmatpush1.msra.mxu0 0.0
      %148 = vmatprep.subr.mxu0 0.0
      %149 = vmatpush1.msra.mxu0 %v116
      %150 = vmatprep.subr.mxu0 0.0
      %151 = vmatpush2.msra.mxu0 0.0
      %152 = vmatprep.subr.mxu0 0.0
      %153 = vmatpush2.msra.mxu0 0.0
      %154 = vmatprep.subr.mxu0 0.0
      %155 = vmatpush2.msra.mxu0 0.0
      %156 = vmatprep.subr.mxu0 0.0
      %157 = vmatpush2.msra.mxu0 0.0
      %158 = vmatprep.subr.mxu0 0.0
      %159 = vmatpush2.msra.mxu0 0.0
      %160 = vmatprep.subr.mxu0 0.0
      %161 = vmatpush2.msra.mxu0 0.0
      %162 = vmatprep.subr.mxu0 0.0
      %163 = vmatpush2.msra.mxu0 0.0
      %164 = vmatprep.subr.mxu0 0.0
      %165 = vmatpush2.msra.mxu0 0.0
      %166 = vmatprep.subr.mxu0 0.0
      %167 = vmatpush2.msra.mxu0 0.0
      %168 = vmatprep.subr.mxu0 0.0
      %169 = vmatpush2.msra.mxu0 0.0
      %170 = vmatprep.subr.mxu0 0.0
      %171 = vmatpush2.msra.mxu0 0.0
      %172 = vmatprep.subr.mxu0 0.0
      %173 = vmatpush2.msra.mxu0 0.0
      %174 = vmatprep.subr.mxu0 0.0
      %175 = vmatpush2.msra.mxu0 0.0
      %176 = vmatprep.subr.mxu0 0.0
      %177 = vmatpush2.msra.mxu0 0.0
      %178 = vmatprep.subr.mxu0 0.0
      %179 = vmatpush2.msra.mxu0 0.0
      %180 = vmatprep.subr.mxu0 0.0
      %181 = vmatpush2.msra.mxu0 0.0
      %182 = vmatprep.mubr.f32.mxu0 0.0
      %183 = vmatmul.mubr.f32.gmra.mxu0 %v113
      %v184 = vpop.f32.mrf.mxu0
      %v185 = vadd.f32 0.0, %v184
      %v186 = vpop.f32.mrf.mxu0
      %187 = vdwg.mxu0
      %v188 = vmax.f32 %v185, 0.0
      %v189 = vld [vmem:[%s2] sm:$0x3]
      %vm190 = vcmask 15360
      %v192 = vsel %vm190, %v188, 0
      %v195 = vsel %vm108, %v189, 0
      %197 = vmatprep.subr.mxu0 0.0
      %198 = vmatpush1.msra.mxu0 0.0
      %199 = vmatprep.subr.mxu0 0.0
      %200 = vmatpush1.msra.mxu0 0.0
      %201 = vmatprep.subr.mxu0 0.0
      %202 = vmatpush1.msra.mxu0 0.0
      %203 = vmatprep.subr.mxu0 0.0
      %204 = vmatpush1.msra.mxu0 0.0
      %205 = vmatprep.subr.mxu0 0.0
      %206 = vmatpush1.msra.mxu0 0.0
      %207 = vmatprep.subr.mxu0 0.0
      %208 = vmatpush1.msra.mxu0 0.0
      %209 = vmatprep.subr.mxu0 0.0
      %210 = vmatpush1.msra.mxu0 0.0
      %211 = vmatprep.subr.mxu0 0.0
      %212 = vmatpush1.msra.mxu0 0.0
      %213 = vmatprep.subr.mxu0 0.0
      %214 = vmatpush1.msra.mxu0 0.0
      %215 = vmatprep.subr.mxu0 0.0
      %216 = vmatpush1.msra.mxu0 0.0
      %217 = vmatprep.subr.mxu0 0.0
      %218 = vmatpush1.msra.mxu0 0.0
      %219 = vmatprep.subr.mxu0 0.0
      %220 = vmatpush1.msra.mxu0 0.0
      %221 = vmatprep.subr.mxu0 0.0
      %222 = vmatpush1.msra.mxu0 0.0
      %223 = vmatprep.subr.mxu0 0.0
      %224 = vmatpush1.msra.mxu0 0.0
      %225 = vmatprep.subr.mxu0 0.0
      %226 = vmatpush1.msra.mxu0 0.0
      %227 = vmatprep.subr.mxu0 0.0
      %228 = vmatpush1.msra.mxu0 %v195
      %229 = vmatprep.subr.mxu0 0.0
      %230 = vmatpush2.msra.mxu0 0.0
      %231 = vmatprep.subr.mxu0 0.0
      %232 = vmatpush2.msra.mxu0 0.0
      %233 = vmatprep.subr.mxu0 0.0
      %234 = vmatpush2.msra.mxu0 0.0
      %235 = vmatprep.subr.mxu0 0.0
      %236 = vmatpush2.msra.mxu0 0.0
      %237 = vmatprep.subr.mxu0 0.0
      %238 = vmatpush2.msra.mxu0 0.0
      %239 = vmatprep.subr.mxu0 0.0
      %240 = vmatpush2.msra.mxu0 0.0
      %241 = vmatprep.subr.mxu0 0.0
      %242 = vmatpush2.msra.mxu0 0.0
      %243 = vmatprep.subr.mxu0 0.0
      %244 = vmatpush2.msra.mxu0 0.0
      %245 = vmatprep.subr.mxu0 0.0
      %246 = vmatpush2.msra.mxu0 0.0
      %247 = vmatprep.subr.mxu0 0.0
      %248 = vmatpush2.msra.mxu0 0.0
      %249 = vmatprep.subr.mxu0 0.0
      %250 = vmatpush2.msra.mxu0 0.0
      %251 = vmatprep.subr.mxu0 0.0
      %252 = vmatpush2.msra.mxu0 0.0
      %253 = vmatprep.subr.mxu0 0.0
      %254 = vmatpush2.msra.mxu0 0.0
      %255 = vmatprep.subr.mxu0 0.0
      %256 = vmatpush2.msra.mxu0 0.0
      %257 = vmatprep.subr.mxu0 0.0
      %258 = vmatpush2.msra.mxu0 0.0
      %259 = vmatprep.subr.mxu0 0.0
      %260 = vmatpush2.msra.mxu0 0.0
      %261 = vmatprep.mubr.f32.mxu0 0.0
      %262 = vmatmul.mubr.f32.gmra.mxu0 %v192
      %v263 = vpop.f32.mrf.mxu0
      %v264 = vadd.f32 0.0, %v263
      %v265 = vpop.f32.mrf.mxu0
      %266 = vdwg.mxu0
      %v268 = vrot.slane %v264, 2
      %v270 = vadd.f32 %v264, %v268
      %271 = vst.msk [vmem:[#allocation7] sm:$0x3] %vm82, %v270
    $region25: #{tpu_custom_call.1} parent=1 // pred_fallthru
      _
    // Predicated region
    $region26: #{tpu_custom_call.1} parent=1 // pred_check
      _
    $region27: #{tpu_custom_call.1} parent=1 // pred_check_branch
      %273 = sbr.rel (0) target = $region29
    $region28: #{tpu_custom_call.1} parent=1 // pred_region
      %s275 = ssub.s32 32, 32
      %276 = vsyncadd [#allocation6], %s275
      %s278 = sshll.u32 [#allocation7], 4
      %s279 = int_to_ptr.vmem [resolvable:$true] %s278
      %281 = dma.vmem_to_hbm [thread:$0]  %s279, 32, %s3, [#allocation6]
    $region29: #{tpu_custom_call.1} parent=1 // pred_fallthru
      _
    // Predicated region
    $region30: #{tpu_custom_call.1} parent=1 // pred_check
      _
    $region31: #{tpu_custom_call.1} parent=1 // pred_check_branch
      %283 = sbr.rel (0) target = $region33
    $region32: #{tpu_custom_call.1} parent=1 // pred_region
      %284 = dma.done [#allocation6], 32
    $region33: #{tpu_custom_call.1} parent=1 // pred_fallthru
      _
    %285 = vsyncpa [#allocation5], 1
    %286 = vsyncpa [#allocation6], 1

</llo_original>
